<compile_context>
chip_gen: v6e
topology: v6e:2x2x1
jax: 0.10.0
libtpu: 0.0.40
codegen_flags: <defaults>
</compile_context>

<pallas_src>
import numpy as np
import jax
import jax.numpy as jnp
from jax.experimental import pallas as pl
from jax.experimental.pallas import tpu as pltpu


def _hadamard_kernel(seq_ref, scale_ref, shift_ref, x_ref, o_ref):
    # seq_ref:   SMEM (2, CE) int32 — selected channel indices (i, j) per exp. channel
    # scale_ref: SMEM (CE,)   f32   — folded BN scale  (gamma / sqrt(var + eps))
    # shift_ref: SMEM (CE,)   f32   — folded BN shift  (beta - mean * scale)
    # x_ref:     VMEM (TB, C1, HW)
    # o_ref:     VMEM (TB, C1 + CE, HW)
    c1 = x_ref.shape[1]
    ce = o_ref.shape[1] - c1

    # Pass-through copy of the original channels (native dtype, no upcast).
    o_ref[:, :c1, :] = x_ref[...]

    # Channel gather + Hadamard product + folded BN, one expansion channel at a
    # time.  CE is small and static -> unrolled Python loop; the VPU work is
    # free filler underneath the HBM-bound DMA stream.
    for e in range(ce):
        i_e = seq_ref[0, e]
        j_e = seq_ref[1, e]
        xi = x_ref[:, pl.ds(i_e, 1), :].astype(jnp.float32)   # (TB, 1, HW)
        xj = x_ref[:, pl.ds(j_e, 1), :].astype(jnp.float32)   # (TB, 1, HW)
        y = (xi * xj) * scale_ref[e] + shift_ref[e]
        o_ref[:, c1 + e:c1 + e + 1, :] = y.astype(o_ref.dtype)


def _round_up(v, m):
    return (v + m - 1) // m * m


def _vmem_capacity_bytes():
    try:
        cap = getattr(pltpu.get_tpu_info(), "vmem_capacity_bytes", None)
        if cap:
            return int(cap)
    except Exception:
        pass
    return 64 << 20            # conservative fallback (v7x per-TensorCore VMEM)


def _pick_batch_block(n, c1, ce, hw, dtype):
    """Pick TB (batch images per grid step) and an explicit scoped-VMEM limit."""
    itemsize = jnp.dtype(dtype).itemsize
    sublane = max(8, 32 // itemsize)            # 8 (f32), 16 (bf16), 32 (int8)
    hw_lanes = _round_up(hw, 128)
    # Real (sublane/lane padded) per-image VMEM footprint of the double-buffered
    # in/out blocks, plus transient f32 row intermediates of the gather+FMA.
    in_b = _round_up(c1, sublane) * hw_lanes * itemsize
    out_b = _round_up(c1 + ce, sublane) * hw_lanes * itemsize
    tmp_b = 4 * 8 * hw_lanes * 4
    per_b = 2 * (in_b + out_b) + tmp_b

    vmem_cap = _vmem_capacity_bytes()
    budget = min(vmem_cap // 2, 48 << 20)       # ~48 MiB on 128 MiB parts, 32 MiB on v7x

    tb = max(1, budget // per_b)
    tb = min(tb, max(1, pl.cdiv(n, 2)))         # keep >= 2 grid steps (megacore on v7x)
    tb = min(tb, n)

    used = tb * per_b + (1 << 20)
    vmem_limit = int(min(vmem_cap - (2 << 20), max(used, 32 << 20)))
    return tb, vmem_limit


def hadamard_expansion(x_nchw, selected_seq, bn_scale, bn_shift):
    """x_nchw: (N, C1, H, W); selected_seq: (2, CE) int; bn_*: (CE,) folded eval BN."""
    N, C1, H, W = x_nchw.shape
    CE = int(bn_scale.shape[0])
    HW = H * W

    x = x_nchw.reshape(N, C1, HW)               # free, contiguous reshape
    seq = selected_seq.astype(jnp.int32)
    scale = bn_scale.astype(jnp.float32)
    shift = bn_shift.astype(jnp.float32)

    TB, vmem_limit = _pick_batch_block(N, C1, CE, HW, x.dtype)

    out = pl.pallas_call(
        _hadamard_kernel,
        out_shape=jax.ShapeDtypeStruct((N, C1 + CE, HW), x.dtype),
        grid_spec=pltpu.PrefetchScalarGridSpec(
            num_scalar_prefetch=1,              # selected_seq -> SMEM
            grid=(pl.cdiv(N, TB),),
            in_specs=[
                pl.BlockSpec(memory_space=pltpu.MemorySpace.SMEM),   # BN scale
                pl.BlockSpec(memory_space=pltpu.MemorySpace.SMEM),   # BN shift
                pl.BlockSpec((TB, C1, HW), lambda n, seq_smem: (n, 0, 0)),
            ],
            out_specs=pl.BlockSpec((TB, C1 + CE, HW),
                                   lambda n, seq_smem: (n, 0, 0)),
        ),
        compiler_params=pltpu.CompilerParams(
            dimension_semantics=("parallel",),
            vmem_limit_bytes=vmem_limit,
        ),
    )(seq, scale, shift, x)

    return out.reshape(N, C1 + CE, H, W)


def build_selection(c1, ce, key):
    """Deterministic stand-in for _update_mask: topk over logits (no gumbel).
    Produces selected_seq (2, CE) exactly as the eval-path forward consumes it."""
    candis_num = c1 * (c1 - 1) // 2
    assert ce <= candis_num, "too much expansion channels required"
    pairs = np.array([(i, j) for i in range(c1) for j in range(i + 1, c1)],
                     dtype=np.int32)                      # (candis_num, 2)
    # logits ~ U(-0.1, 0.1), as in torch.nn.init.uniform_(logits, -0.1, 0.1)
    logits = jax.random.uniform(key, (candis_num,), minval=-0.1, maxval=0.1)
    _, topk_idx = jax.lax.top_k(logits, ce)
    sel_pairs = jnp.asarray(pairs)[topk_idx]              # (CE, 2)
    return sel_pairs.T                                    # (2, CE)


def _reference(x, selected_seq, bn_scale, bn_shift):
    CE = bn_scale.shape[0]
    x_i = x[:, selected_seq[0]]
    x_j = x[:, selected_seq[1]]
    x_expand = x_i * x_j
    x_expand = x_expand * bn_scale.reshape(1, CE, 1, 1) + bn_shift.reshape(1, CE, 1, 1)
    return jnp.concatenate([x, x_expand], axis=1)


def _run_case(key, N, C1, H, W, CE):
    k_x, k_logits = jax.random.split(key)
    x = jax.random.normal(k_x, (N, C1, H, W), dtype=jnp.float32)
    selected_seq = build_selection(C1, CE, k_logits)

    # BatchNorm2d(ce) fresh-init eval params: gamma=1, beta=0, mean=0, var=1
    eps = 1e-5
    gamma = jnp.ones((CE,), jnp.float32)
    beta = jnp.zeros((CE,), jnp.float32)
    running_mean = jnp.zeros((CE,), jnp.float32)
    running_var = jnp.ones((CE,), jnp.float32)
    bn_scale = gamma / jnp.sqrt(running_var + eps)
    bn_shift = beta - running_mean * bn_scale

    out = hadamard_expansion(x, selected_seq, bn_scale, bn_shift)
    out = jax.block_until_ready(out)

    ref = _reference(x, selected_seq, bn_scale, bn_shift)
    assert out.shape == (N, C1 + CE, H, W), out.shape
    np.testing.assert_allclose(np.asarray(out), np.asarray(ref), rtol=1e-5, atol=1e-5)


if __name__ == "__main__":
    key = jax.random.PRNGKey(0)
    k0, k1 = jax.random.split(key)

    # Main case (module-implied small shapes): lane-aligned HW, grid of 2 steps.
    _run_case(k0, N=2, C1=4, H=16, W=16, CE=4)
    # Secondary case: HW not a multiple of 128 (unpadded last dim) and N=3 with
    # TB=2 -> partial last batch block (exercises cdiv grid + masked writeback).
    _run_case(k1, N=3, C1=4, H=6, W=6, CE=4)

    print("KERNEL_OK")
</pallas_src>

<mosaic_0001>
module attributes {stable_mosaic.version = 11 : i64} {
  func.func @_hadamard_kernel(%arg0: i32, %arg1: memref<2x4xi32, #tpu.memory_space<smem>>, %arg2: memref<4xf32, #tpu.memory_space<smem>>, %arg3: memref<4xf32, #tpu.memory_space<smem>>, %arg4: memref<1x4x256xf32, #tpu.memory_space<vmem>>, %arg5: memref<1x8x256xf32, #tpu.memory_space<vmem>>) attributes {dimension_semantics = [#tpu.dimension_semantics<parallel>], iteration_bounds = array<i64: 2>, scalar_prefetch = 1 : i64, scratch_operands = 0 : i64, tpu.core_type = #tpu.core_type<tc>, window_params = [{transform_indices = @transform_0, window_bounds = array<i64: 4>}, {transform_indices = @transform_1, window_bounds = array<i64: 4>}, {transform_indices = @transform_2, window_bounds = array<i64: 1, 4, 256>}, {transform_indices = @transform_3, window_bounds = array<i64: 1, 8, 256>}]} {
    %c0 = arith.constant 0 : index
    %c0_0 = arith.constant 0 : index
    %c0_1 = arith.constant 0 : index
    %0 = vector.load %arg4[%c0, %c0_0, %c0_1] : memref<1x4x256xf32, #tpu.memory_space<vmem>>, vector<1x4x256xf32>
    %c0_2 = arith.constant 0 : index
    %c0_3 = arith.constant 0 : index
    %c0_4 = arith.constant 0 : index
    %1 = vector.load %arg5[%c0_2, %c0_3, %c0_4] : memref<1x8x256xf32, #tpu.memory_space<vmem>>, vector<1x4x256xf32>
    tpu.vector_store %arg5[%c0_2, %c0_3, %c0_4], %0 {strides = array<i32>} : memref<1x8x256xf32, #tpu.memory_space<vmem>>, vector<1x4x256xf32>,
    %c0_5 = arith.constant 0 : index
    %c0_6 = arith.constant 0 : index
    %2 = memref.load %arg1[%c0_5, %c0_6] : memref<2x4xi32, #tpu.memory_space<smem>>
    %c1 = arith.constant 1 : index
    %c0_7 = arith.constant 0 : index
    %3 = memref.load %arg1[%c1, %c0_7] : memref<2x4xi32, #tpu.memory_space<smem>>
    %c0_8 = arith.constant 0 : index
    %4 = arith.index_cast %2 : i32 to index
    %c0_9 = arith.constant 0 : index
    %5 = vector.load %arg4[%c0_8, %4, %c0_9] : memref<1x4x256xf32, #tpu.memory_space<vmem>>, vector<1x1x256xf32>
    %c0_10 = arith.constant 0 : index
    %6 = arith.index_cast %3 : i32 to index
    %c0_11 = arith.constant 0 : index
    %7 = vector.load %arg4[%c0_10, %6, %c0_11] : memref<1x4x256xf32, #tpu.memory_space<vmem>>, vector<1x1x256xf32>
    %8 = arith.mulf %5, %7 : vector<1x1x256xf32>
    %c0_12 = arith.constant 0 : index
    %9 = memref.load %arg2[%c0_12] : memref<4xf32, #tpu.memory_space<smem>>
    %10 = vector.broadcast %9 : f32 to vector<1x1x256xf32>
    %11 = arith.mulf %8, %10 : vector<1x1x256xf32>
    %c0_13 = arith.constant 0 : index
    %12 = memref.load %arg3[%c0_13] : memref<4xf32, #tpu.memory_space<smem>>
    %13 = vector.broadcast %12 : f32 to vector<1x1x256xf32>
    %14 = arith.addf %11, %13 : vector<1x1x256xf32>
    %c0_14 = arith.constant 0 : index
    %c4 = arith.constant 4 : index
    %c0_15 = arith.constant 0 : index
    %15 = vector.load %arg5[%c0_14, %c4, %c0_15] : memref<1x8x256xf32, #tpu.memory_space<vmem>>, vector<1x1x256xf32>
    tpu.vector_store %arg5[%c0_14, %c4, %c0_15], %14 {strides = array<i32>} : memref<1x8x256xf32, #tpu.memory_space<vmem>>, vector<1x1x256xf32>,
    %c0_16 = arith.constant 0 : index
    %c1_17 = arith.constant 1 : index
    %16 = memref.load %arg1[%c0_16, %c1_17] : memref<2x4xi32, #tpu.memory_space<smem>>
    %c1_18 = arith.constant 1 : index
    %c1_19 = arith.constant 1 : index
    %17 = memref.load %arg1[%c1_18, %c1_19] : memref<2x4xi32, #tpu.memory_space<smem>>
    %c0_20 = arith.constant 0 : index
    %18 = arith.index_cast %16 : i32 to index
    %c0_21 = arith.constant 0 : index
    %19 = vector.load %arg4[%c0_20, %18, %c0_21] : memref<1x4x256xf32, #tpu.memory_space<vmem>>, vector<1x1x256xf32>
    %c0_22 = arith.constant 0 : index
    %20 = arith.index_cast %17 : i32 to index
    %c0_23 = arith.constant 0 : index
    %21 = vector.load %arg4[%c0_22, %20, %c0_23] : memref<1x4x256xf32, #tpu.memory_space<vmem>>, vector<1x1x256xf32>
    %22 = arith.mulf %19, %21 : vector<1x1x256xf32>
    %c1_24 = arith.constant 1 : index
    %23 = memref.load %arg2[%c1_24] : memref<4xf32, #tpu.memory_space<smem>>
    %24 = vector.broadcast %23 : f32 to vector<1x1x256xf32>
    %25 = arith.mulf %22, %24 : vector<1x1x256xf32>
    %c1_25 = arith.constant 1 : index
    %26 = memref.load %arg3[%c1_25] : memref<4xf32, #tpu.memory_space<smem>>
    %27 = vector.broadcast %26 : f32 to vector<1x1x256xf32>
    %28 = arith.addf %25, %27 : vector<1x1x256xf32>
    %c0_26 = arith.constant 0 : index
    %c5 = arith.constant 5 : index
    %c0_27 = arith.constant 0 : index
    %29 = vector.load %arg5[%c0_26, %c5, %c0_27] : memref<1x8x256xf32, #tpu.memory_space<vmem>>, vector<1x1x256xf32>
    tpu.vector_store %arg5[%c0_26, %c5, %c0_27], %28 {strides = array<i32>} : memref<1x8x256xf32, #tpu.memory_space<vmem>>, vector<1x1x256xf32>,
    %c0_28 = arith.constant 0 : index
    %c2 = arith.constant 2 : index
    %30 = memref.load %arg1[%c0_28, %c2] : memref<2x4xi32, #tpu.memory_space<smem>>
    %c1_29 = arith.constant 1 : index
    %c2_30 = arith.constant 2 : index
    %31 = memref.load %arg1[%c1_29, %c2_30] : memref<2x4xi32, #tpu.memory_space<smem>>
    %c0_31 = arith.constant 0 : index
    %32 = arith.index_cast %30 : i32 to index
    %c0_32 = arith.constant 0 : index
    %33 = vector.load %arg4[%c0_31, %32, %c0_32] : memref<1x4x256xf32, #tpu.memory_space<vmem>>, vector<1x1x256xf32>
    %c0_33 = arith.constant 0 : index
    %34 = arith.index_cast %31 : i32 to index
    %c0_34 = arith.constant 0 : index
    %35 = vector.load %arg4[%c0_33, %34, %c0_34] : memref<1x4x256xf32, #tpu.memory_space<vmem>>, vector<1x1x256xf32>
    %36 = arith.mulf %33, %35 : vector<1x1x256xf32>
    %c2_35 = arith.constant 2 : index
    %37 = memref.load %arg2[%c2_35] : memref<4xf32, #tpu.memory_space<smem>>
    %38 = vector.broadcast %37 : f32 to vector<1x1x256xf32>
    %39 = arith.mulf %36, %38 : vector<1x1x256xf32>
    %c2_36 = arith.constant 2 : index
    %40 = memref.load %arg3[%c2_36] : memref<4xf32, #tpu.memory_space<smem>>
    %41 = vector.broadcast %40 : f32 to vector<1x1x256xf32>
    %42 = arith.addf %39, %41 : vector<1x1x256xf32>
    %c0_37 = arith.constant 0 : index
    %c6 = arith.constant 6 : index
    %c0_38 = arith.constant 0 : index
    %43 = vector.load %arg5[%c0_37, %c6, %c0_38] : memref<1x8x256xf32, #tpu.memory_space<vmem>>, vector<1x1x256xf32>
    tpu.vector_store %arg5[%c0_37, %c6, %c0_38], %42 {strides = array<i32>} : memref<1x8x256xf32, #tpu.memory_space<vmem>>, vector<1x1x256xf32>,
    %c0_39 = arith.constant 0 : index
    %c3 = arith.constant 3 : index
    %44 = memref.load %arg1[%c0_39, %c3] : memref<2x4xi32, #tpu.memory_space<smem>>
    %c1_40 = arith.constant 1 : index
    %c3_41 = arith.constant 3 : index
    %45 = memref.load %arg1[%c1_40, %c3_41] : memref<2x4xi32, #tpu.memory_space<smem>>
    %c0_42 = arith.constant 0 : index
    %46 = arith.index_cast %44 : i32 to index
    %c0_43 = arith.constant 0 : index
    %47 = vector.load %arg4[%c0_42, %46, %c0_43] : memref<1x4x256xf32, #tpu.memory_space<vmem>>, vector<1x1x256xf32>
    %c0_44 = arith.constant 0 : index
    %48 = arith.index_cast %45 : i32 to index
    %c0_45 = arith.constant 0 : index
    %49 = vector.load %arg4[%c0_44, %48, %c0_45] : memref<1x4x256xf32, #tpu.memory_space<vmem>>, vector<1x1x256xf32>
    %50 = arith.mulf %47, %49 : vector<1x1x256xf32>
    %c3_46 = arith.constant 3 : index
    %51 = memref.load %arg2[%c3_46] : memref<4xf32, #tpu.memory_space<smem>>
    %52 = vector.broadcast %51 : f32 to vector<1x1x256xf32>
    %53 = arith.mulf %50, %52 : vector<1x1x256xf32>
    %c3_47 = arith.constant 3 : index
    %54 = memref.load %arg3[%c3_47] : memref<4xf32, #tpu.memory_space<smem>>
    %55 = vector.broadcast %54 : f32 to vector<1x1x256xf32>
    %56 = arith.addf %53, %55 : vector<1x1x256xf32>
    %c0_48 = arith.constant 0 : index
    %c7 = arith.constant 7 : index
    %c0_49 = arith.constant 0 : index
    %57 = vector.load %arg5[%c0_48, %c7, %c0_49] : memref<1x8x256xf32, #tpu.memory_space<vmem>>, vector<1x1x256xf32>
    tpu.vector_store %arg5[%c0_48, %c7, %c0_49], %56 {strides = array<i32>} : memref<1x8x256xf32, #tpu.memory_space<vmem>>, vector<1x1x256xf32>,
    return
  }
  func.func @transform_0(%arg0: i32, %arg1: memref<2x4xi32, #tpu.memory_space<smem>>) -> i32 {
    %c0_i32 = arith.constant 0 : i32
    %c0_i32_0 = arith.constant 0 : i32
    return %c0_i32 : i32
  }
  func.func @transform_1(%arg0: i32, %arg1: memref<2x4xi32, #tpu.memory_space<smem>>) -> i32 {
    %c0_i32 = arith.constant 0 : i32
    %c0_i32_0 = arith.constant 0 : i32
    return %c0_i32 : i32
  }
  func.func @transform_2(%arg0: i32, %arg1: memref<2x4xi32, #tpu.memory_space<smem>>) -> (i32, i32, i32) {
    %c0_i32 = arith.constant 0 : i32
    %c0_i32_0 = arith.constant 0 : i32
    %c0_i32_1 = arith.constant 0 : i32
    return %arg0, %c0_i32, %c0_i32_0 : i32, i32, i32
  }
  func.func @transform_3(%arg0: i32, %arg1: memref<2x4xi32, #tpu.memory_space<smem>>) -> (i32, i32, i32) {
    %c0_i32 = arith.constant 0 : i32
    %c0_i32_0 = arith.constant 0 : i32
    %c0_i32_1 = arith.constant 0 : i32
    return %arg0, %c0_i32, %c0_i32_0 : i32, i32, i32
  }
}

</mosaic_0001>

<llo_original>
// kernel: tpu_custom_call.1
$region0: #{tpu_custom_call.1}
  #allocation0 [shape = 'u32[]', space=smem, size = 0x4, offset = 0x4, fixed_abs, tag = 'smem constant byte address 0x4 - core index']
  #allocation1 [shape = 'u32[144,128]{1,0:T(1,128)}', space=vmem, size = 0x12000, scoped, tag = 'internal scratch']
  #allocation2 [shape = 's32[1]{0}', space=sflag, size = 0x4, scoped, tag = 'scoped memory for tpu_custom_call.1']
  #allocation3 [shape = 'u8[1024]{0}', space=smem, size = 0x400, scoped, tag = 'prefetched SMEM operand 0']
  %s0 = inlined_call_operand.hbm [shape: s32[2,4], index: 0, kind: input, shape index: {}]
  %s1 = inlined_call_operand.vmem [shape: f32[4], index: 1, kind: input, shape index: {}]
  %s2 = inlined_call_operand.vmem [shape: f32[4], index: 2, kind: input, shape index: {}]
  %s3 = inlined_call_operand.hbm [shape: f32[2,4,256], index: 3, kind: input, shape index: {}]
  %s4 = inlined_call_operand.hbm [shape: f32[2,8,256], index: 4, kind: output, shape index: {}]
  %s5 = sld [smem:[#allocation0]]
  $region57: #{tpu_custom_call.1} parent=0
    _
  %s7 = ssub.s32 1, %s5
  %s8 = scalar_select 0, %s7, %s5
  %10 = dma.hbm_to_smem %s0, 32, [#allocation3], [#allocation2]
  %11 = dma.done [#allocation2], 32
  %12 = sfence
  $region1: #{tpu_custom_call.1} parent=0
    #allocation4 [shape = 'u8[512]{0}', space=smem, size = 0x200, scoped, tag = 'input window, operand 1, single buffered']
    #allocation5 [shape = 's32[2]{0}', space=sflag, size = 0x8, scoped, tag = 'scoped memory for tpu_custom_call.1']
    #allocation6 [shape = 's32[2]{0}', space=sflag, size = 0x8, scoped, tag = 'scoped memory for tpu_custom_call.1']
    #allocation7 [shape = 's32[2]{0}', space=sflag, size = 0x8, scoped, tag = 'scoped memory for tpu_custom_call.1']
    #allocation8 [shape = 'u8[512]{0}', space=smem, size = 0x200, scoped, tag = 'input window, operand 2, single buffered']
    #allocation9 [shape = 's32[1]{0}', space=sflag, size = 0x4, scoped, tag = 'scoped memory for tpu_custom_call.1']
    #allocation10 [shape = 'u8[8192]{0}', space=vmem, size = 0x2000, scoped, tag = 'input window, operand 3']
    #allocation11 [shape = 'u8[16384]{0}', space=vmem, size = 0x4000, scoped, tag = 'output window, operand 0']
    %13 = vsyncpa [#allocation7], 0
    %14 = vsyncpa [#allocation9], 0
    %15 = vsyncpa [#allocation5], 0
    %s16 = scalar_lea.sflag [#allocation5], 1
    %17 = vsyncpa %s16, 0
    %18 = vsyncpa [#allocation6], 0
    %s19 = scalar_lea.sflag [#allocation6], 1
    %20 = vsyncpa %s19, 0
    loop: start=0, step=1, limit=4
    $region2: #{tpu_custom_call.1} parent=1 // loop_pre_header
      _
    $region3: #{tpu_custom_call.1} parent=1 // loop_header
      %s22 = sphi 0, %s26
      %p23 = scmp.ge.s32.totalorder %s22, 4
      %s30 = sphi 0, %s30
      %s32 = sphi 0, %s30
      %s33 = sphi 0, %s32
      %s47 = sphi 0, %s33
      %s51 = sphi 0, %s51
      %s53 = sphi 0, %s51
      %s54 = sphi 0, %s53
      %s68 = sphi 0, %s54
      %s74 = sphi 0, %s76
      %s77 = sphi 0, %s74
      %s78 = sphi 0, %s77
      %s94 = sphi 0, %s78
      %s100 = sphi 0, %s102
      %s103 = sphi 0, %s100
      %s104 = sphi 0, %s103
      %s120 = sphi 0, %s104
    $region4: #{tpu_custom_call.1} parent=1 // loop_header_branch
      %25 = sbr.rel (%p23) target = $region8
    $region5: #{tpu_custom_call.1} parent=1 // loop_body
      %s27 = ssub.s32 %s22, 1
      %s28 = ssub.s32 %s22, 2
      %s29 = sadd.s32 %s22, 1
      %s31 = sadd.s32 %s30, 1
      %p34 = scmp.eq.s32.totalorder %s22, 1
      %p35 = scmp.ne.s32.totalorder %s30, %s32
      %p36 = scmp.eq.s32.totalorder %s22, 0
      %p37 = por %p35, %p36
      %p38 = scmp.ne.s32.totalorder %s30, %s32
      %p39 = scmp.eq.s32.totalorder %s27, 1
      %p40 = por %p38, %p39
      %p41 = scmp.ne.s32.totalorder %s32, %s33
      %p42 = scmp.eq.s32.totalorder %s27, 0
      %p43 = por %p41, %p42
      %p44 = scmp.ne.s32.totalorder %s32, %s33
      %p45 = scmp.eq.s32.totalorder %s28, 1
      %p46 = por %p44, %p45
      %p48 = scmp.ne.s32.totalorder %s33, %s47
      %p49 = scmp.eq.s32.totalorder %s28, 0
      %p50 = por %p48, %p49
      %s52 = sadd.s32 %s51, 1
      %p55 = scmp.eq.s32.totalorder %s22, 1
      %p56 = scmp.ne.s32.totalorder %s51, %s53
      %p57 = scmp.eq.s32.totalorder %s22, 0
      %p58 = por %p56, %p57
      %p59 = scmp.ne.s32.totalorder %s51, %s53
      %p60 = scmp.eq.s32.totalorder %s27, 1
      %p61 = por %p59, %p60
      %p62 = scmp.ne.s32.totalorder %s53, %s54
      %p63 = scmp.eq.s32.totalorder %s27, 0
      %p64 = por %p62, %p63
      %p65 = scmp.ne.s32.totalorder %s53, %s54
      %p66 = scmp.eq.s32.totalorder %s28, 1
      %p67 = por %p65, %p66
      %p69 = scmp.ne.s32.totalorder %s54, %s68
      %p70 = scmp.eq.s32.totalorder %s28, 0
      %p71 = por %p69, %p70
      %s72 = ssub.s32 %s22, %s29
      %p73 = scmp.eq.s32.totalorder %s72, 0
      %s75 = sadd.s32 %s74, 1
      %s76 = scalar_select %p73, %s74, %s75
      %p79 = pneg %p73
      %p80 = scmp.eq.s32.totalorder %s22, 1
      %p81 = por %p79, %p80
      %p82 = scmp.ne.s32.totalorder %s74, %s77
      %p83 = scmp.eq.s32.totalorder %s22, 0
      %p84 = por %p82, %p83
      %p85 = scmp.ne.s32.totalorder %s74, %s77
      %p86 = scmp.eq.s32.totalorder %s27, 1
      %p87 = por %p85, %p86
      %p88 = scmp.ne.s32.totalorder %s77, %s78
      %p89 = scmp.eq.s32.totalorder %s27, 0
      %p90 = por %p88, %p89
      %p91 = scmp.ne.s32.totalorder %s77, %s78
      %p92 = scmp.eq.s32.totalorder %s28, 1
      %p93 = por %p91, %p92
      %p95 = scmp.ne.s32.totalorder %s78, %s94
      %p96 = scmp.eq.s32.totalorder %s28, 0
      %p97 = por %p95, %p96
      %s98 = ssub.s32 %s22, %s29
      %p99 = scmp.eq.s32.totalorder %s98, 0
      %s101 = sadd.s32 %s100, 1
      %s102 = scalar_select %p99, %s100, %s101
      %p105 = pneg %p99
      %p106 = scmp.eq.s32.totalorder %s22, 1
      %p107 = por %p105, %p106
      %p108 = scmp.ne.s32.totalorder %s100, %s103
      %p109 = scmp.eq.s32.totalorder %s22, 0
      %p110 = por %p108, %p109
      %p111 = scmp.ne.s32.totalorder %s100, %s103
      %p112 = scmp.eq.s32.totalorder %s27, 1
      %p113 = por %p111, %p112
      %p114 = scmp.ne.s32.totalorder %s103, %s104
      %p115 = scmp.eq.s32.totalorder %s27, 0
      %p116 = por %p114, %p115
      %p117 = scmp.ne.s32.totalorder %s103, %s104
      %p118 = scmp.eq.s32.totalorder %s28, 1
      %p119 = por %p117, %p118
      %p121 = scmp.ne.s32.totalorder %s104, %s120
      %p122 = scmp.eq.s32.totalorder %s28, 0
      %p123 = por %p121, %p122
      %p124 = scmp.le.s32.totalorder 1, %s22
      %p125 = scmp.lt.s32.totalorder %s22, 3
      %p126 = pnand %p124, %p125
      %p127 = pneg %p126
      // Predicated region
      $region9: #{tpu_custom_call.1} parent=5 // pred_check
        _
      $region10: #{tpu_custom_call.1} parent=5 // pred_check_branch
        %129 = sbr.rel (%p126) target = $region12
      $region11: #{tpu_custom_call.1} parent=5 // pred_region
        %s130 = ssub.s32 %s22, 1
        // Predicated region
        $region13: #{tpu_custom_call.1} parent=11 // pred_check
          %p131 = pneg %p43
        $region14: #{tpu_custom_call.1} parent=11 // pred_check_branch
          %133 = sbr.rel (%p131) target = $region16
        $region15: #{tpu_custom_call.1} parent=11 // pred_region
          %s135 = ssub.s32 16, 16
          %136 = vsyncadd [#allocation7], %s135
          %s138 = sshll.u32 %s1, 4
          %s139 = int_to_ptr.vmem [resolvable:$true] %s138
          %141 = dma.vmem_to_smem %s139, 16, [#allocation4], [#allocation7]
        $region16: #{tpu_custom_call.1} parent=11 // pred_fallthru
          _
        // Predicated region
        $region17: #{tpu_custom_call.1} parent=11 // pred_check
          %p142 = pneg %p64
        $region18: #{tpu_custom_call.1} parent=11 // pred_check_branch
          %144 = sbr.rel (%p142) target = $region20
        $region19: #{tpu_custom_call.1} parent=11 // pred_region
          %s146 = ssub.s32 16, 16
          %147 = vsyncadd [#allocation9], %s146
          %s149 = sshll.u32 %s2, 4
          %s150 = int_to_ptr.vmem [resolvable:$true] %s149
          %152 = dma.vmem_to_smem %s150, 16, [#allocation8], [#allocation9]
        $region20: #{tpu_custom_call.1} parent=11 // pred_fallthru
          _
      $region12: #{tpu_custom_call.1} parent=5 // pred_fallthru
        _
      %p153 = scmp.lt.s32.totalorder %s22, 2
      // Predicated region
      $region21: #{tpu_custom_call.1} parent=5 // pred_check
        %p154 = pneg %p153
      $region22: #{tpu_custom_call.1} parent=5 // pred_check_branch
        %156 = sbr.rel (%p154) target = $region24
      $region23: #{tpu_custom_call.1} parent=5 // pred_region
        // Predicated region
        $region25: #{tpu_custom_call.1} parent=23 // pred_check
          %p157 = pneg %p84
        $region26: #{tpu_custom_call.1} parent=23 // pred_check_branch
          %159 = sbr.rel (%p157) target = $region28
        $region27: #{tpu_custom_call.1} parent=23 // pred_region
          %s160 = sand.u32 %s74, 1
          %s161 = scalar_lea.sflag [#allocation5], %s160
          %s162 = sand.u32 %s74, 1
          %s163 = smul.addr %s162, 8
          %s164 = scalar_lea.vmem [#allocation10], %s163
          %s166 = ssub.s32 128, 128
          %167 = vsyncadd %s161, %s166
          %s168 = smul.addr %s22, 2
          %s169 = smul.addr %s168, 64
          %s170 = scalar_lea.hbm %s3, %s169
          %s172 = sshll.u32 %s164, 4
          %s173 = int_to_ptr.vmem [resolvable:$true] %s172
          %175 = dma.hbm_to_vmem [thread:$0]  %s170, 128, %s173, %s161
        $region28: #{tpu_custom_call.1} parent=23 // pred_fallthru
          _
      $region24: #{tpu_custom_call.1} parent=5 // pred_fallthru
        _
      %p176 = scmp.le.s32.totalorder 1, %s22
      %p177 = scmp.lt.s32.totalorder %s22, 3
      %p178 = pnand %p176, %p177
      %p179 = pneg %p178
      // Predicated region
      $region29: #{tpu_custom_call.1} parent=5 // pred_check
        _
      $region30: #{tpu_custom_call.1} parent=5 // pred_check_branch
        %181 = sbr.rel (%p178) target = $region32
      $region31: #{tpu_custom_call.1} parent=5 // pred_region
        %s182 = ssub.s32 %s22, 1
        // Predicated region
        $region33: #{tpu_custom_call.1} parent=31 // pred_check
          %p183 = pneg %p43
        $region34: #{tpu_custom_call.1} parent=31 // pred_check_branch
          %185 = sbr.rel (%p183) target = $region36
        $region35: #{tpu_custom_call.1} parent=31 // pred_region
          %186 = dma.done [#allocation7], 16
        $region36: #{tpu_custom_call.1} parent=31 // pred_fallthru
          _
        // Predicated region
        $region37: #{tpu_custom_call.1} parent=31 // pred_check
          %p187 = pneg %p64
        $region38: #{tpu_custom_call.1} parent=31 // pred_check_branch
          %189 = sbr.rel (%p187) target = $region40
        $region39: #{tpu_custom_call.1} parent=31 // pred_region
          %190 = dma.done [#allocation9], 16
        $region40: #{tpu_custom_call.1} parent=31 // pred_fallthru
          _
        %s191 = sand.u32 %s77, 1
        %s192 = scalar_lea.sflag [#allocation5], %s191
        %s193 = sand.u32 %s77, 1
        %s194 = smul.addr %s193, 8
        %s195 = scalar_lea.vmem [#allocation10], %s194
        // Predicated region
        $region41: #{tpu_custom_call.1} parent=31 // pred_check
          %p196 = pneg %p90
        $region42: #{tpu_custom_call.1} parent=31 // pred_check_branch
          %198 = sbr.rel (%p196) target = $region44
        $region43: #{tpu_custom_call.1} parent=31 // pred_region
          %199 = dma.done %s192, 128
        $region44: #{tpu_custom_call.1} parent=31 // pred_fallthru
          _
        %200 = sfence
        %p201 = pneg %p43
        %p202 = pneg %p40
        %p203 = pneg %p64
        %p204 = pneg %p61
        %s205 = sand.u32 %s77, 1
        %s206 = scalar_lea.sflag [#allocation5], %s205
        %s207 = sand.u32 %s77, 1
        %s208 = smul.addr %s207, 8
        %s209 = scalar_lea.vmem [#allocation10], %s208
        %p210 = pneg %p90
        %p211 = pneg %p87
        %p212 = pneg %p116
        %p213 = pneg %p113
        %s214 = sand.u32 %s103, 1
        %s215 = scalar_lea.sflag [#allocation6], %s214
        %s216 = sand.u32 %s103, 1
        %s217 = smul.addr %s216, 16
        %s218 = scalar_lea.vmem [#allocation11], %s217
        %v219 = vld [vmem:[%s195] sm:$0xff]
        %v221 = vcombine.high %v219, %v219
        %223 = vst [vmem:[%s218] sm:$0xf] %v219
        %224 = vst [vmem:[%s218 + $0x8] sm:$0xf] %v221
        %s225 = sld [smem:[#allocation3]]
        %s226 = sld [smem:[#allocation3 + $0x80]]
        %s227 = sshra.s32 %s225, 2
        %s228 = sand.u32 %s225, 3
        %s229 = sshra.s32 %s225, 2
        %s230 = sand.u32 %s225, 3
        %s231 = smul.u32 %s227, 2
        %s232 = smul.u32 %s231, 4
        %s233 = sadd.s32 %s232, %s230
        %s234 = scalar_lea.vmem %s195, %s233 [#allocation10]
        %v235 = vld [vmem:[%s234] ss:$4 sm:$0x3]
        %s236 = sshra.s32 %s226, 2
        %s237 = sand.u32 %s226, 3
        %s238 = sshra.s32 %s226, 2
        %s239 = sand.u32 %s226, 3
        %s240 = smul.u32 %s236, 2
        %s241 = smul.u32 %s240, 4
        %s242 = sadd.s32 %s241, %s239
        %s243 = scalar_lea.vmem %s195, %s242 [#allocation10]
        %v244 = vld [vmem:[%s243] ss:$4 sm:$0x3]
        %v245 = vmul.f32 %v235, %v244
        %s246 = sld [smem:[#allocation4]]
        %v247 = vstv %s246
        %v248 = vmul.f32 %v245, %v247
        %s249 = sld [smem:[#allocation8]]
        %v250 = vstv %s249
        %v251 = vadd.f32 %v248, %v250
        %v252 = vlaneseq
        %vm253 = vcmp.ge.s32.totalorder %v252, 0
        %vm254 = vcmp.lt.s32.totalorder %v252, 256
        %vm255 = vmand %vm253, %vm254
        %s256 = scalar_lea.vmem %s218, 4 [#allocation11]
        %257 = vst.msk [vmem:[%s256] ss:$8 sm:$0x3] %vm255, %v251
        %258 = vst.msk [vmem:[%s256] ss:$8 sm:$0x0] %vm255, %v251
        %s259 = sld [smem:[#allocation3 + $0x1]]
        %s260 = sld [smem:[#allocation3 + $0x81]]
        %s261 = sshra.s32 %s259, 2
        %s262 = sand.u32 %s259, 3
        %s263 = sshra.s32 %s259, 2
        %s264 = sand.u32 %s259, 3
        %s265 = smul.u32 %s261, 2
        %s266 = smul.u32 %s265, 4
        %s267 = sadd.s32 %s266, %s264
        %s268 = scalar_lea.vmem %s195, %s267 [#allocation10]
        %v269 = vld [vmem:[%s268] ss:$4 sm:$0x3]
        %s270 = sshra.s32 %s260, 2
        %s271 = sand.u32 %s260, 3
        %s272 = sshra.s32 %s260, 2
        %s273 = sand.u32 %s260, 3
        %s274 = smul.u32 %s270, 2
        %s275 = smul.u32 %s274, 4
        %s276 = sadd.s32 %s275, %s273
        %s277 = scalar_lea.vmem %s195, %s276 [#allocation10]
        %v278 = vld [vmem:[%s277] ss:$4 sm:$0x3]
        %v279 = vmul.f32 %v269, %v278
        %s280 = sld [smem:[#allocation4 + $0x1]]
        %v281 = vstv %s280
        %v282 = vmul.f32 %v279, %v281
        %s283 = sld [smem:[#allocation8 + $0x1]]
        %v284 = vstv %s283
        %v285 = vadd.f32 %v282, %v284
        %s286 = scalar_lea.vmem %s218, 5 [#allocation11]
        %287 = vst.msk [vmem:[%s286] ss:$8 sm:$0x3] %vm255, %v285
        %288 = vst.msk [vmem:[%s286] ss:$8 sm:$0x0] %vm255, %v285
        %s289 = sld [smem:[#allocation3 + $0x2]]
        %s290 = sld [smem:[#allocation3 + $0x82]]
        %s291 = sshra.s32 %s289, 2
        %s292 = sand.u32 %s289, 3
        %s293 = sshra.s32 %s289, 2
        %s294 = sand.u32 %s289, 3
        %s295 = smul.u32 %s291, 2
        %s296 = smul.u32 %s295, 4
        %s297 = sadd.s32 %s296, %s294
        %s298 = scalar_lea.vmem %s195, %s297 [#allocation10]
        %v299 = vld [vmem:[%s298] ss:$4 sm:$0x3]
        %s300 = sshra.s32 %s290, 2
        %s301 = sand.u32 %s290, 3
        %s302 = sshra.s32 %s290, 2
        %s303 = sand.u32 %s290, 3
        %s304 = smul.u32 %s300, 2
        %s305 = smul.u32 %s304, 4
        %s306 = sadd.s32 %s305, %s303
        %s307 = scalar_lea.vmem %s195, %s306 [#allocation10]
        %v308 = vld [vmem:[%s307] ss:$4 sm:$0x3]
        %v309 = vmul.f32 %v299, %v308
        %s310 = sld [smem:[#allocation4 + $0x2]]
        %v311 = vstv %s310
        %v312 = vmul.f32 %v309, %v311
        %s313 = sld [smem:[#allocation8 + $0x2]]
        %v314 = vstv %s313
        %v315 = vadd.f32 %v312, %v314
        %s316 = scalar_lea.vmem %s218, 6 [#allocation11]
        %317 = vst.msk [vmem:[%s316] ss:$8 sm:$0x3] %vm255, %v315
        %318 = vst.msk [vmem:[%s316] ss:$8 sm:$0x0] %vm255, %v315
        %s319 = sld [smem:[#allocation3 + $0x3]]
        %s320 = sld [smem:[#allocation3 + $0x83]]
        %s321 = sshra.s32 %s319, 2
        %s322 = sand.u32 %s319, 3
        %s323 = sshra.s32 %s319, 2
        %s324 = sand.u32 %s319, 3
        %s325 = smul.u32 %s321, 2
        %s326 = smul.u32 %s325, 4
        %s327 = sadd.s32 %s326, %s324
        %s328 = scalar_lea.vmem %s195, %s327 [#allocation10]
        %v329 = vld [vmem:[%s328] ss:$4 sm:$0x3]
        %s330 = sshra.s32 %s320, 2
        %s331 = sand.u32 %s320, 3
        %s332 = sshra.s32 %s320, 2
        %s333 = sand.u32 %s320, 3
        %s334 = smul.u32 %s330, 2
        %s335 = smul.u32 %s334, 4
        %s336 = sadd.s32 %s335, %s333
        %s337 = scalar_lea.vmem %s195, %s336 [#allocation10]
        %v338 = vld [vmem:[%s337] ss:$4 sm:$0x3]
        %v339 = vmul.f32 %v329, %v338
        %s340 = sld [smem:[#allocation4 + $0x3]]
        %v341 = vstv %s340
        %v342 = vmul.f32 %v339, %v341
        %s343 = sld [smem:[#allocation8 + $0x3]]
        %v344 = vstv %s343
        %v345 = vadd.f32 %v342, %v344
        %s346 = scalar_lea.vmem %s218, 7 [#allocation11]
        %347 = vst.msk [vmem:[%s346] ss:$8 sm:$0x3] %vm255, %v345
        %348 = vst.msk [vmem:[%s346] ss:$8 sm:$0x0] %vm255, %v345
        %s349 = sand.u32 %s103, 1
        %s350 = scalar_lea.sflag [#allocation6], %s349
        %s351 = sand.u32 %s103, 1
        %s352 = smul.addr %s351, 16
        %s353 = scalar_lea.vmem [#allocation11], %s352
        // Predicated region
        $region45: #{tpu_custom_call.1} parent=31 // pred_check
          %p354 = pneg %p113
        $region46: #{tpu_custom_call.1} parent=31 // pred_check_branch
          %356 = sbr.rel (%p354) target = $region48
        $region47: #{tpu_custom_call.1} parent=31 // pred_region
          %s358 = ssub.s32 256, 256
          %359 = vsyncadd %s350, %s358
          %s360 = smul.addr %s27, 2
          %s361 = smul.addr %s360, 128
          %s362 = scalar_lea.hbm %s4, %s361
          %s364 = sshll.u32 %s353, 4
          %s365 = int_to_ptr.vmem [resolvable:$true] %s364
          %367 = dma.vmem_to_hbm [thread:$0]  %s365, 256, %s362, %s350
        $region48: #{tpu_custom_call.1} parent=31 // pred_fallthru
          _
      $region32: #{tpu_custom_call.1} parent=5 // pred_fallthru
        _
      %p368 = scmp.le.s32.totalorder 2, %s22
      // Predicated region
      $region49: #{tpu_custom_call.1} parent=5 // pred_check
        %p369 = pneg %p368
      $region50: #{tpu_custom_call.1} parent=5 // pred_check_branch
        %371 = sbr.rel (%p369) target = $region52
      $region51: #{tpu_custom_call.1} parent=5 // pred_region
        %s372 = ssub.s32 %s22, 2
        // Predicated region
        $region53: #{tpu_custom_call.1} parent=51 // pred_check
          %p373 = pneg %p119
        $region54: #{tpu_custom_call.1} parent=51 // pred_check_branch
          %375 = sbr.rel (%p373) target = $region56
        $region55: #{tpu_custom_call.1} parent=51 // pred_region
          %s376 = sand.u32 %s104, 1
          %s377 = scalar_lea.sflag [#allocation6], %s376
          %s378 = sand.u32 %s104, 1
          %s379 = smul.addr %s378, 16
          %s380 = scalar_lea.vmem [#allocation11], %s379
          %381 = dma.done %s377, 256
        $region56: #{tpu_custom_call.1} parent=51 // pred_fallthru
          _
      $region52: #{tpu_custom_call.1} parent=5 // pred_fallthru
        _
    $region6: #{tpu_custom_call.1} parent=1 // loop_footer
      %s26 = sadd.s32 1, %s22
    $region7: #{tpu_custom_call.1} parent=1 // loop_footer_branch
      %21 = sbr.rel target = $region3
    $region8: #{tpu_custom_call.1} parent=1 // loop_exit
      _
    %382 = vsyncpa [#allocation5], 1
    %s383 = scalar_lea.sflag [#allocation5], 1
    %384 = vsyncpa %s383, 1
    %385 = vsyncpa [#allocation6], 1
    %s386 = scalar_lea.sflag [#allocation6], 1
    %387 = vsyncpa %s386, 1
    %388 = vsyncpa [#allocation7], 1
    %s389 = scalar_lea.sflag [#allocation7], 1
    %390 = vsyncpa %s389, 1
    %391 = vsyncpa [#allocation9], 1

</llo_original>
